<compile_context>
chip_gen: v5e
topology: v5e:2x2
jax: 0.10.0
libtpu: 0.0.40
codegen_flags: <defaults>
</compile_context>

<pallas_src>
import functools

import jax
import jax.numpy as jnp
from jax.experimental import pallas as pl
from jax.experimental.pallas import tpu as pltpu

TILE_B = 128  # lane-dense batch tile (multiple of 128)


def shifted_rbm_kernel(wu_ref, wt_ref, bh_ref, bv_ref, vr_ref, uh_ref, uv_ref,
                       out_ref, *, beta):
    """One batch tile of the CDk=1 ShiftedRBM forward pass."""
    WU = wu_ref[...]       # (H, V+H)  fused [W | U]
    W_T = wt_ref[...]      # (V, H)    pre-transposed W
    b_h = bh_ref[...]      # (H, 1)    hidden bias (broadcast over batch)
    b_v = bv_ref[...]      # (V, 1)    visible bias (broadcast over batch)
    vr = vr_ref[...]       # (V+H, TB) stacked [v ; r_lag]
    u_h = uh_ref[...]      # (H, TB)   uniforms for hidden Bernoulli
    u_v = uv_ref[...]      # (V, TB)   uniforms for visible Bernoulli

    # _sample_h_given_v_r_lag : one fused matmul, K = V + H
    pre_h = beta * (jnp.dot(WU, vr, preferred_element_type=jnp.float32) + b_h)
    h_mean = jax.nn.sigmoid(pre_h)
    h_sample = (u_h < h_mean).astype(jnp.float32)

    # _sample_v_given_h : pre-transposed W -> plain matmul, no XLU transpose
    pre_v = beta * (jnp.dot(W_T, h_sample, preferred_element_type=jnp.float32)
                    + b_v)
    v_mean = jax.nn.sigmoid(pre_v)
    v_sample = (u_v < v_mean).astype(out_ref.dtype)

    out_ref[...] = v_sample


def prepare_params(W, U, b_h, b_v):
    """One-time parameter preprocessing (cast / fuse / transpose / reshape)."""
    n_hidden, n_visible = W.shape
    # The torch module uses b_h (length n_visible) as the HIDDEN bias and
    # b_v (length n_hidden) as the VISIBLE bias; that only broadcasts when
    # n_hidden == n_visible, so make that load-bearing constraint explicit.
    assert n_hidden == n_visible, "ShiftedRBM bias layout requires H == V"
    assert b_h.shape == (n_visible,) and b_v.shape == (n_hidden,)

    W = jnp.asarray(W, jnp.float32)
    U = jnp.asarray(U, jnp.float32)
    WU = jnp.concatenate([W, U], axis=1)                       # (H, V+H)
    W_T = W.T                                                  # (V, H)
    bh = jnp.asarray(b_h, jnp.float32).reshape(n_hidden, 1)    # hidden bias
    bv = jnp.asarray(b_v, jnp.float32).reshape(n_visible, 1)   # visible bias
    return WU, W_T, bh, bv


def shifted_rbm_forward(params, v_data, r_lag, key, beta=1.0, tile_b=TILE_B):
    """CDk = 1 forward pass of ShiftedRBM. Returns v_model of shape (V, B)."""
    WU, W_T, bh, bv = params
    n_visible, n_hidden = W_T.shape
    k_total = n_visible + n_hidden
    batch = v_data.shape[1]

    # Pad the batch axis to a multiple of the lane-dense tile.
    pad = (-batch) % tile_b
    batch_p = batch + pad

    # Stack [v ; r_lag] once so the kernel does a single K=(V+H) matmul.
    vr = jnp.concatenate(
        [jnp.asarray(v_data, jnp.float32), jnp.asarray(r_lag, jnp.float32)],
        axis=0)                                                # (V+H, B)
    if pad:
        vr = jnp.pad(vr, ((0, 0), (0, pad)))

    # Bernoulli uniforms drawn once per call (independent per tile via slicing).
    k_h, k_v = jax.random.split(key)
    u_h = jax.random.uniform(k_h, (n_hidden, batch_p), jnp.float32)
    u_v = jax.random.uniform(k_v, (n_visible, batch_p), jnp.float32)

    grid = (batch_p // tile_b,)

    out = pl.pallas_call(
        functools.partial(shifted_rbm_kernel, beta=float(beta)),
        out_shape=jax.ShapeDtypeStruct((n_visible, batch_p), jnp.float32),
        grid=grid,
        in_specs=[
            pl.BlockSpec((n_hidden, k_total), lambda i: (0, 0)),    # WU
            pl.BlockSpec((n_visible, n_hidden), lambda i: (0, 0)),  # W_T
            pl.BlockSpec((n_hidden, 1), lambda i: (0, 0)),          # b_h
            pl.BlockSpec((n_visible, 1), lambda i: (0, 0)),         # b_v
            pl.BlockSpec((k_total, tile_b), lambda i: (0, i)),      # [v; r]
            pl.BlockSpec((n_hidden, tile_b), lambda i: (0, i)),     # u_h
            pl.BlockSpec((n_visible, tile_b), lambda i: (0, i)),    # u_v
        ],
        out_specs=pl.BlockSpec((n_visible, tile_b), lambda i: (0, i)),
        compiler_params=pltpu.CompilerParams(
            dimension_semantics=("parallel",)),
    )(WU, W_T, bh, bv, vr, u_h, u_v)

    return out[:, :batch] if pad else out


if __name__ == "__main__":
    key = jax.random.PRNGKey(0)
    # The module's bias broadcasting requires n_hidden == n_visible.
    n_hidden = n_visible = 32
    batch = 256  # multiple of 128 -> lane-dense tiles, grid of 2 batch tiles

    k_w, k_u, k_v, k_r, k_fwd = jax.random.split(key, 5)
    W = 0.01 * jax.random.normal(k_w, (n_hidden, n_visible), jnp.float32)
    U = 0.01 * jax.random.normal(k_u, (n_hidden, n_hidden), jnp.float32)
    b_h = jnp.zeros((n_visible,), jnp.float32)   # shapes exactly as in __init__
    b_v = jnp.zeros((n_hidden,), jnp.float32)

    v_data = (jax.random.uniform(k_v, (n_visible, batch)) < 0.5).astype(
        jnp.float32)
    r_lag = jax.random.uniform(k_r, (n_hidden, batch), dtype=jnp.float32)

    params = prepare_params(W, U, b_h, b_v)
    v_model = shifted_rbm_forward(params, v_data, r_lag, k_fwd, beta=1.0)
    jax.block_until_ready(v_model)

    assert v_model.shape == (n_visible, batch)
    assert bool(jnp.all((v_model == 0.0) | (v_model == 1.0)))
    print("KERNEL_OK")
</pallas_src>

<mosaic_0001>
module attributes {stable_mosaic.version = 11 : i64} {
  func.func @shifted_rbm_kernel(%arg0: i32, %arg1: memref<32x64xf32, #tpu.memory_space<vmem>>, %arg2: memref<32x32xf32, #tpu.memory_space<vmem>>, %arg3: memref<32x1xf32, #tpu.memory_space<vmem>>, %arg4: memref<32x1xf32, #tpu.memory_space<vmem>>, %arg5: memref<64x128xf32, #tpu.memory_space<vmem>>, %arg6: memref<32x128xf32, #tpu.memory_space<vmem>>, %arg7: memref<32x128xf32, #tpu.memory_space<vmem>>, %arg8: memref<32x128xf32, #tpu.memory_space<vmem>>) attributes {dimension_semantics = [#tpu.dimension_semantics<parallel>], iteration_bounds = array<i64: 2>, scalar_prefetch = 0 : i64, scratch_operands = 0 : i64, tpu.core_type = #tpu.core_type<tc>, window_params = [{pipeline_mode = #tpu.pipeline_mode<synchronous>, transform_indices = @transform_0, window_bounds = array<i64: 32, 64>}, {pipeline_mode = #tpu.pipeline_mode<synchronous>, transform_indices = @transform_1, window_bounds = array<i64: 32, 32>}, {pipeline_mode = #tpu.pipeline_mode<synchronous>, transform_indices = @transform_2, window_bounds = array<i64: 32, 1>}, {pipeline_mode = #tpu.pipeline_mode<synchronous>, transform_indices = @transform_3, window_bounds = array<i64: 32, 1>}, {transform_indices = @transform_4, window_bounds = array<i64: 64, 128>}, {transform_indices = @transform_5, window_bounds = array<i64: 32, 128>}, {transform_indices = @transform_6, window_bounds = array<i64: 32, 128>}, {transform_indices = @transform_7, window_bounds = array<i64: 32, 128>}]} {
    %c0 = arith.constant 0 : index
    %c0_0 = arith.constant 0 : index
    %0 = vector.load %arg1[%c0, %c0_0] : memref<32x64xf32, #tpu.memory_space<vmem>>, vector<32x64xf32>
    %c0_1 = arith.constant 0 : index
    %c0_2 = arith.constant 0 : index
    %1 = vector.load %arg2[%c0_1, %c0_2] : memref<32x32xf32, #tpu.memory_space<vmem>>, vector<32x32xf32>
    %c0_3 = arith.constant 0 : index
    %c0_4 = arith.constant 0 : index
    %2 = vector.load %arg3[%c0_3, %c0_4] : memref<32x1xf32, #tpu.memory_space<vmem>>, vector<32x1xf32>
    %c0_5 = arith.constant 0 : index
    %c0_6 = arith.constant 0 : index
    %3 = vector.load %arg4[%c0_5, %c0_6] : memref<32x1xf32, #tpu.memory_space<vmem>>, vector<32x1xf32>
    %c0_7 = arith.constant 0 : index
    %c0_8 = arith.constant 0 : index
    %4 = vector.load %arg5[%c0_7, %c0_8] : memref<64x128xf32, #tpu.memory_space<vmem>>, vector<64x128xf32>
    %c0_9 = arith.constant 0 : index
    %c0_10 = arith.constant 0 : index
    %5 = vector.load %arg6[%c0_9, %c0_10] : memref<32x128xf32, #tpu.memory_space<vmem>>, vector<32x128xf32>
    %c0_11 = arith.constant 0 : index
    %c0_12 = arith.constant 0 : index
    %6 = vector.load %arg7[%c0_11, %c0_12] : memref<32x128xf32, #tpu.memory_space<vmem>>, vector<32x128xf32>
    %cst = arith.constant dense<0.000000e+00> : vector<32x128xf32>
    %7 = tpu.matmul %0, %4, %cst {dimension_numbers = #tpu.dot_dimension_numbers<[1], [0], [0], [1], [0, 0, 1, 1], [], []>} : vector<32x64xf32>, vector<64x128xf32>, vector<32x128xf32> -> vector<32x128xf32>
    %8 = vector.broadcast %2 : vector<32x1xf32> to vector<32x128xf32>
    %9 = arith.addf %7, %8 : vector<32x128xf32>
    %cst_13 = arith.constant 1.000000e+00 : f32
    %10 = vector.broadcast %cst_13 : f32 to vector<32x128xf32>
    %11 = arith.mulf %10, %9 : vector<32x128xf32>
    %12 = arith.negf %11 : vector<32x128xf32>
    %13 = math.exp %12 : vector<32x128xf32>
    %cst_14 = arith.constant 1.000000e+00 : f32
    %14 = vector.broadcast %cst_14 : f32 to vector<32x128xf32>
    %15 = arith.addf %14, %13 : vector<32x128xf32>
    %16 = arith.divf %14, %15 : vector<32x128xf32>
    %17 = arith.cmpf olt, %5, %16 : vector<32x128xf32>
    %18 = arith.extui %17 : vector<32x128xi1> to vector<32x128xi32>
    %19 = arith.sitofp %18 : vector<32x128xi32> to vector<32x128xf32>
    %cst_15 = arith.constant dense<0.000000e+00> : vector<32x128xf32>
    %20 = tpu.matmul %1, %19, %cst_15 {dimension_numbers = #tpu.dot_dimension_numbers<[1], [0], [0], [1], [0, 0, 1, 1], [], []>} : vector<32x32xf32>, vector<32x128xf32>, vector<32x128xf32> -> vector<32x128xf32>
    %21 = vector.broadcast %3 : vector<32x1xf32> to vector<32x128xf32>
    %22 = arith.addf %20, %21 : vector<32x128xf32>
    %cst_16 = arith.constant 1.000000e+00 : f32
    %23 = vector.broadcast %cst_16 : f32 to vector<32x128xf32>
    %24 = arith.mulf %23, %22 : vector<32x128xf32>
    %25 = arith.negf %24 : vector<32x128xf32>
    %26 = math.exp %25 : vector<32x128xf32>
    %cst_17 = arith.constant 1.000000e+00 : f32
    %27 = vector.broadcast %cst_17 : f32 to vector<32x128xf32>
    %28 = arith.addf %27, %26 : vector<32x128xf32>
    %29 = arith.divf %27, %28 : vector<32x128xf32>
    %30 = arith.cmpf olt, %6, %29 : vector<32x128xf32>
    %31 = arith.extui %30 : vector<32x128xi1> to vector<32x128xi32>
    %32 = arith.sitofp %31 : vector<32x128xi32> to vector<32x128xf32>
    %c0_18 = arith.constant 0 : index
    %c0_19 = arith.constant 0 : index
    %33 = vector.load %arg8[%c0_18, %c0_19] : memref<32x128xf32, #tpu.memory_space<vmem>>, vector<32x128xf32>
    tpu.vector_store %arg8[%c0_18, %c0_19], %32 {strides = array<i32>} : memref<32x128xf32, #tpu.memory_space<vmem>>, vector<32x128xf32>,
    return
  }
  func.func @transform_0(%arg0: i32) -> (i32, i32) {
    %c0_i32 = arith.constant 0 : i32
    %c0_i32_0 = arith.constant 0 : i32
    %c0_i32_1 = arith.constant 0 : i32
    return %c0_i32, %c0_i32_0 : i32, i32
  }
  func.func @transform_1(%arg0: i32) -> (i32, i32) {
    %c0_i32 = arith.constant 0 : i32
    %c0_i32_0 = arith.constant 0 : i32
    %c0_i32_1 = arith.constant 0 : i32
    return %c0_i32, %c0_i32_0 : i32, i32
  }
  func.func @transform_2(%arg0: i32) -> (i32, i32) {
    %c0_i32 = arith.constant 0 : i32
    %c0_i32_0 = arith.constant 0 : i32
    %c0_i32_1 = arith.constant 0 : i32
    return %c0_i32, %c0_i32_0 : i32, i32
  }
  func.func @transform_3(%arg0: i32) -> (i32, i32) {
    %c0_i32 = arith.constant 0 : i32
    %c0_i32_0 = arith.constant 0 : i32
    %c0_i32_1 = arith.constant 0 : i32
    return %c0_i32, %c0_i32_0 : i32, i32
  }
  func.func @transform_4(%arg0: i32) -> (i32, i32) {
    %c0_i32 = arith.constant 0 : i32
    %c0_i32_0 = arith.constant 0 : i32
    return %c0_i32, %arg0 : i32, i32
  }
  func.func @transform_5(%arg0: i32) -> (i32, i32) {
    %c0_i32 = arith.constant 0 : i32
    %c0_i32_0 = arith.constant 0 : i32
    return %c0_i32, %arg0 : i32, i32
  }
  func.func @transform_6(%arg0: i32) -> (i32, i32) {
    %c0_i32 = arith.constant 0 : i32
    %c0_i32_0 = arith.constant 0 : i32
    return %c0_i32, %arg0 : i32, i32
  }
  func.func @transform_7(%arg0: i32) -> (i32, i32) {
    %c0_i32 = arith.constant 0 : i32
    %c0_i32_0 = arith.constant 0 : i32
    return %c0_i32, %arg0 : i32, i32
  }
}

</mosaic_0001>

<llo_original>
// kernel: tpu_custom_call.1
$region0: #{tpu_custom_call.1}
  #allocation0 [shape = 'u32[]', space=smem, size = 0x4, offset = 0x4, fixed_abs, tag = 'smem constant byte address 0x4 - core index']
  #allocation1 [shape = 'u32[72,128]{1,0:T(1,128)}', space=vmem, size = 0x9000, scoped, tag = 'internal scratch']
  %s0 = inlined_call_operand.hbm [shape: f32[32,64], index: 0, kind: input, shape index: {}]
  %s1 = inlined_call_operand.hbm [shape: f32[32,32], index: 1, kind: input, shape index: {}]
  %s2 = inlined_call_operand.vmem [shape: f32[32,1], index: 2, kind: input, shape index: {}]
  %s3 = inlined_call_operand.vmem [shape: f32[32,1], index: 3, kind: input, shape index: {}]
  %s4 = inlined_call_operand.hbm [shape: f32[64,256], index: 4, kind: input, shape index: {}]
  %s5 = inlined_call_operand.vmem [shape: f32[32,256], index: 5, kind: input, shape index: {}]
  %s6 = inlined_call_operand.hbm [shape: f32[32,256], index: 6, kind: input, shape index: {}]
  %s7 = inlined_call_operand.hbm [shape: f32[32,256], index: 7, kind: output, shape index: {}]
  %s8 = sld [smem:[#allocation0]]
  $region115: #{tpu_custom_call.1} parent=0
    _
  %s10 = ssub.s32 1, %s8
  %s11 = scalar_select 0, %s10, %s8
  $region1: #{tpu_custom_call.1} parent=0
    #allocation2 [shape = 'u8[16384]{0}', space=vmem, size = 0x4000, scoped, tag = 'input window, operand 0, single buffered']
    #allocation3 [shape = 's32[2]{0}', space=sflag, size = 0x8, scoped, tag = 'scoped memory for tpu_custom_call.1']
    #allocation4 [shape = 's32[2]{0}', space=sflag, size = 0x8, scoped, tag = 'scoped memory for tpu_custom_call.1']
    #allocation5 [shape = 'u8[16384]{0}', space=vmem, size = 0x4000, scoped, tag = 'input window, operand 1, single buffered']
    #allocation6 [shape = 's32[1]{0}', space=sflag, size = 0x4, scoped, tag = 'scoped memory for tpu_custom_call.1']
    #allocation7 [shape = 'u8[65536]{0}', space=vmem, size = 0x10000, scoped, tag = 'input window, operand 4']
    #allocation8 [shape = 'u8[32768]{0}', space=vmem, size = 0x8000, scoped, tag = 'input window, operand 5']
    #allocation9 [shape = 'u8[32768]{0}', space=vmem, size = 0x8000, scoped, tag = 'input window, operand 6']
    #allocation10 [shape = 'u8[32768]{0}', space=vmem, size = 0x8000, scoped, tag = 'output window, operand 0']
    %12 = vsyncpa [#allocation3], 0
    %13 = vsyncpa [#allocation6], 0
    %14 = vsyncpa [#allocation4], 0
    %s15 = scalar_lea.sflag [#allocation4], 1
    %16 = vsyncpa %s15, 0
    loop: start=0, step=1, limit=4
    $region2: #{tpu_custom_call.1} parent=1 // loop_pre_header
      _
    $region3: #{tpu_custom_call.1} parent=1 // loop_header
      %s18 = sphi 0, %s22
      %p19 = scmp.ge.s32.totalorder %s18, 4
      %s26 = sphi 0, %s26
      %s28 = sphi 0, %s26
      %s29 = sphi 0, %s28
      %s43 = sphi 0, %s29
      %s47 = sphi 0, %s47
      %s49 = sphi 0, %s47
      %s50 = sphi 0, %s49
      %s64 = sphi 0, %s50
      %s68 = sphi 0, %s68
      %s70 = sphi 0, %s68
      %s71 = sphi 0, %s70
      %s85 = sphi 0, %s71
      %s89 = sphi 0, %s89
      %s91 = sphi 0, %s89
      %s92 = sphi 0, %s91
      %s106 = sphi 0, %s92
      %s112 = sphi 0, %s114
      %s115 = sphi 0, %s112
      %s116 = sphi 0, %s115
      %s132 = sphi 0, %s116
      %s138 = sphi 0, %s140
      %s141 = sphi 0, %s138
      %s142 = sphi 0, %s141
      %s158 = sphi 0, %s142
      %s164 = sphi 0, %s166
      %s167 = sphi 0, %s164
      %s168 = sphi 0, %s167
      %s184 = sphi 0, %s168
      %s190 = sphi 0, %s192
      %s193 = sphi 0, %s190
      %s194 = sphi 0, %s193
      %s210 = sphi 0, %s194
    $region4: #{tpu_custom_call.1} parent=1 // loop_header_branch
      %21 = sbr.rel (%p19) target = $region8
    $region5: #{tpu_custom_call.1} parent=1 // loop_body
      %s23 = ssub.s32 %s18, 1
      %s24 = ssub.s32 %s18, 2
      %s25 = sadd.s32 %s18, 1
      %s27 = sadd.s32 %s26, 1
      %p30 = scmp.eq.s32.totalorder %s18, 1
      %p31 = scmp.ne.s32.totalorder %s26, %s28
      %p32 = scmp.eq.s32.totalorder %s18, 0
      %p33 = por %p31, %p32
      %p34 = scmp.ne.s32.totalorder %s26, %s28
      %p35 = scmp.eq.s32.totalorder %s23, 1
      %p36 = por %p34, %p35
      %p37 = scmp.ne.s32.totalorder %s28, %s29
      %p38 = scmp.eq.s32.totalorder %s23, 0
      %p39 = por %p37, %p38
      %p40 = scmp.ne.s32.totalorder %s28, %s29
      %p41 = scmp.eq.s32.totalorder %s24, 1
      %p42 = por %p40, %p41
      %p44 = scmp.ne.s32.totalorder %s29, %s43
      %p45 = scmp.eq.s32.totalorder %s24, 0
      %p46 = por %p44, %p45
      %s48 = sadd.s32 %s47, 1
      %p51 = scmp.eq.s32.totalorder %s18, 1
      %p52 = scmp.ne.s32.totalorder %s47, %s49
      %p53 = scmp.eq.s32.totalorder %s18, 0
      %p54 = por %p52, %p53
      %p55 = scmp.ne.s32.totalorder %s47, %s49
      %p56 = scmp.eq.s32.totalorder %s23, 1
      %p57 = por %p55, %p56
      %p58 = scmp.ne.s32.totalorder %s49, %s50
      %p59 = scmp.eq.s32.totalorder %s23, 0
      %p60 = por %p58, %p59
      %p61 = scmp.ne.s32.totalorder %s49, %s50
      %p62 = scmp.eq.s32.totalorder %s24, 1
      %p63 = por %p61, %p62
      %p65 = scmp.ne.s32.totalorder %s50, %s64
      %p66 = scmp.eq.s32.totalorder %s24, 0
      %p67 = por %p65, %p66
      %s69 = sadd.s32 %s68, 1
      %p72 = scmp.eq.s32.totalorder %s18, 1
      %p73 = scmp.ne.s32.totalorder %s68, %s70
      %p74 = scmp.eq.s32.totalorder %s18, 0
      %p75 = por %p73, %p74
      %p76 = scmp.ne.s32.totalorder %s68, %s70
      %p77 = scmp.eq.s32.totalorder %s23, 1
      %p78 = por %p76, %p77
      %p79 = scmp.ne.s32.totalorder %s70, %s71
      %p80 = scmp.eq.s32.totalorder %s23, 0
      %p81 = por %p79, %p80
      %p82 = scmp.ne.s32.totalorder %s70, %s71
      %p83 = scmp.eq.s32.totalorder %s24, 1
      %p84 = por %p82, %p83
      %p86 = scmp.ne.s32.totalorder %s71, %s85
      %p87 = scmp.eq.s32.totalorder %s24, 0
      %p88 = por %p86, %p87
      %s90 = sadd.s32 %s89, 1
      %p93 = scmp.eq.s32.totalorder %s18, 1
      %p94 = scmp.ne.s32.totalorder %s89, %s91
      %p95 = scmp.eq.s32.totalorder %s18, 0
      %p96 = por %p94, %p95
      %p97 = scmp.ne.s32.totalorder %s89, %s91
      %p98 = scmp.eq.s32.totalorder %s23, 1
      %p99 = por %p97, %p98
      %p100 = scmp.ne.s32.totalorder %s91, %s92
      %p101 = scmp.eq.s32.totalorder %s23, 0
      %p102 = por %p100, %p101
      %p103 = scmp.ne.s32.totalorder %s91, %s92
      %p104 = scmp.eq.s32.totalorder %s24, 1
      %p105 = por %p103, %p104
      %p107 = scmp.ne.s32.totalorder %s92, %s106
      %p108 = scmp.eq.s32.totalorder %s24, 0
      %p109 = por %p107, %p108
      %s110 = ssub.s32 %s18, %s25
      %p111 = scmp.eq.s32.totalorder %s110, 0
      %s113 = sadd.s32 %s112, 1
      %s114 = scalar_select %p111, %s112, %s113
      %p117 = pneg %p111
      %p118 = scmp.eq.s32.totalorder %s18, 1
      %p119 = por %p117, %p118
      %p120 = scmp.ne.s32.totalorder %s112, %s115
      %p121 = scmp.eq.s32.totalorder %s18, 0
      %p122 = por %p120, %p121
      %p123 = scmp.ne.s32.totalorder %s112, %s115
      %p124 = scmp.eq.s32.totalorder %s23, 1
      %p125 = por %p123, %p124
      %p126 = scmp.ne.s32.totalorder %s115, %s116
      %p127 = scmp.eq.s32.totalorder %s23, 0
      %p128 = por %p126, %p127
      %p129 = scmp.ne.s32.totalorder %s115, %s116
      %p130 = scmp.eq.s32.totalorder %s24, 1
      %p131 = por %p129, %p130
      %p133 = scmp.ne.s32.totalorder %s116, %s132
      %p134 = scmp.eq.s32.totalorder %s24, 0
      %p135 = por %p133, %p134
      %s136 = ssub.s32 %s18, %s25
      %p137 = scmp.eq.s32.totalorder %s136, 0
      %s139 = sadd.s32 %s138, 1
      %s140 = scalar_select %p137, %s138, %s139
      %p143 = pneg %p137
      %p144 = scmp.eq.s32.totalorder %s18, 1
      %p145 = por %p143, %p144
      %p146 = scmp.ne.s32.totalorder %s138, %s141
      %p147 = scmp.eq.s32.totalorder %s18, 0
      %p148 = por %p146, %p147
      %p149 = scmp.ne.s32.totalorder %s138, %s141
      %p150 = scmp.eq.s32.totalorder %s23, 1
      %p151 = por %p149, %p150
      %p152 = scmp.ne.s32.totalorder %s141, %s142
      %p153 = scmp.eq.s32.totalorder %s23, 0
      %p154 = por %p152, %p153
      %p155 = scmp.ne.s32.totalorder %s141, %s142
      %p156 = scmp.eq.s32.totalorder %s24, 1
      %p157 = por %p155, %p156
      %p159 = scmp.ne.s32.totalorder %s142, %s158
      %p160 = scmp.eq.s32.totalorder %s24, 0
      %p161 = por %p159, %p160
      %s162 = ssub.s32 %s18, %s25
      %p163 = scmp.eq.s32.totalorder %s162, 0
      %s165 = sadd.s32 %s164, 1
      %s166 = scalar_select %p163, %s164, %s165
      %p169 = pneg %p163
      %p170 = scmp.eq.s32.totalorder %s18, 1
      %p171 = por %p169, %p170
      %p172 = scmp.ne.s32.totalorder %s164, %s167
      %p173 = scmp.eq.s32.totalorder %s18, 0
      %p174 = por %p172, %p173
      %p175 = scmp.ne.s32.totalorder %s164, %s167
      %p176 = scmp.eq.s32.totalorder %s23, 1
      %p177 = por %p175, %p176
      %p178 = scmp.ne.s32.totalorder %s167, %s168
      %p179 = scmp.eq.s32.totalorder %s23, 0
      %p180 = por %p178, %p179
      %p181 = scmp.ne.s32.totalorder %s167, %s168
      %p182 = scmp.eq.s32.totalorder %s24, 1
      %p183 = por %p181, %p182
      %p185 = scmp.ne.s32.totalorder %s168, %s184
      %p186 = scmp.eq.s32.totalorder %s24, 0
      %p187 = por %p185, %p186
      %s188 = ssub.s32 %s18, %s25
      %p189 = scmp.eq.s32.totalorder %s188, 0
      %s191 = sadd.s32 %s190, 1
      %s192 = scalar_select %p189, %s190, %s191
      %p195 = pneg %p189
      %p196 = scmp.eq.s32.totalorder %s18, 1
      %p197 = por %p195, %p196
      %p198 = scmp.ne.s32.totalorder %s190, %s193
      %p199 = scmp.eq.s32.totalorder %s18, 0
      %p200 = por %p198, %p199
      %p201 = scmp.ne.s32.totalorder %s190, %s193
      %p202 = scmp.eq.s32.totalorder %s23, 1
      %p203 = por %p201, %p202
      %p204 = scmp.ne.s32.totalorder %s193, %s194
      %p205 = scmp.eq.s32.totalorder %s23, 0
      %p206 = por %p204, %p205
      %p207 = scmp.ne.s32.totalorder %s193, %s194
      %p208 = scmp.eq.s32.totalorder %s24, 1
      %p209 = por %p207, %p208
      %p211 = scmp.ne.s32.totalorder %s194, %s210
      %p212 = scmp.eq.s32.totalorder %s24, 0
      %p213 = por %p211, %p212
      %p214 = scmp.le.s32.totalorder 1, %s18
      %p215 = scmp.lt.s32.totalorder %s18, 3
      %p216 = pnand %p214, %p215
      %p217 = pneg %p216
      // Predicated region
      $region9: #{tpu_custom_call.1} parent=5 // pred_check
        _
      $region10: #{tpu_custom_call.1} parent=5 // pred_check_branch
        %219 = sbr.rel (%p216) target = $region12
      $region11: #{tpu_custom_call.1} parent=5 // pred_region
        %s220 = ssub.s32 %s18, 1
        // Predicated region
        $region13: #{tpu_custom_call.1} parent=11 // pred_check
          %p221 = pneg %p39
        $region14: #{tpu_custom_call.1} parent=11 // pred_check_branch
          %223 = sbr.rel (%p221) target = $region16
        $region15: #{tpu_custom_call.1} parent=11 // pred_region
          %225 = vsyncadd [#allocation3], 0
          %s226 = sshll.u32 %s0, 4
          %s227 = int_to_ptr.hbm [resolvable:$true] %s226
          %s228 = sshll.u32 [#allocation2], 4
          %s229 = int_to_ptr.vmem [resolvable:$true] %s228
          %234 = dma.hbm_to_vmem [thread:$0]  %s227, 512, %s229, [#allocation3], 128, 128, 8
        $region16: #{tpu_custom_call.1} parent=11 // pred_fallthru
          _
        // Predicated region
        $region17: #{tpu_custom_call.1} parent=11 // pred_check
          %p235 = pneg %p60
        $region18: #{tpu_custom_call.1} parent=11 // pred_check_branch
          %237 = sbr.rel (%p235) target = $region20
        $region19: #{tpu_custom_call.1} parent=11 // pred_region
          %239 = vsyncadd [#allocation6], 0
          %s240 = sshll.u32 %s1, 4
          %s241 = int_to_ptr.hbm [resolvable:$true] %s240
          %s242 = sshll.u32 [#allocation5], 4
          %s243 = int_to_ptr.vmem [resolvable:$true] %s242
          %248 = dma.hbm_to_vmem [thread:$0]  %s241, 512, %s243, [#allocation6], 128, 128, 8
        $region20: #{tpu_custom_call.1} parent=11 // pred_fallthru
          _
        // Predicated region
        $region21: #{tpu_custom_call.1} parent=11 // pred_check
          %p249 = pneg %p81
        $region22: #{tpu_custom_call.1} parent=11 // pred_check_branch
          %251 = sbr.rel (%p249) target = $region24
        $region23: #{tpu_custom_call.1} parent=11 // pred_region
          _
        $region24: #{tpu_custom_call.1} parent=11 // pred_fallthru
          _
        // Predicated region
        $region25: #{tpu_custom_call.1} parent=11 // pred_check
          %p252 = pneg %p102
        $region26: #{tpu_custom_call.1} parent=11 // pred_check_branch
          %254 = sbr.rel (%p252) target = $region28
        $region27: #{tpu_custom_call.1} parent=11 // pred_region
          _
        $region28: #{tpu_custom_call.1} parent=11 // pred_fallthru
          _
      $region12: #{tpu_custom_call.1} parent=5 // pred_fallthru
        _
      %p255 = scmp.lt.s32.totalorder %s18, 2
      // Predicated region
      $region29: #{tpu_custom_call.1} parent=5 // pred_check
        %p256 = pneg %p255
      $region30: #{tpu_custom_call.1} parent=5 // pred_check_branch
        %258 = sbr.rel (%p256) target = $region32
      $region31: #{tpu_custom_call.1} parent=5 // pred_region
        // Predicated region
        $region33: #{tpu_custom_call.1} parent=31 // pred_check
          %p259 = pneg %p122
        $region34: #{tpu_custom_call.1} parent=31 // pred_check_branch
          %261 = sbr.rel (%p259) target = $region36
        $region35: #{tpu_custom_call.1} parent=31 // pred_region
          %s262 = sand.u32 %s18, 1
          %s263 = scalar_lea.sflag [#allocation3], %s262
          %s264 = sand.u32 %s112, 1
          %s265 = smul.addr %s264, 64
          %s266 = scalar_lea.vmem [#allocation7], %s265
          %268 = vsyncadd %s263, 0
          %s269 = smul.addr %s18, 8
          %s270 = scalar_lea.hbm %s4, %s269
          %s271 = sshll.u32 %s270, 4
          %s272 = int_to_ptr.hbm [resolvable:$true] %s271
          %s273 = sshll.u32 %s266, 4
          %s274 = int_to_ptr.vmem [resolvable:$true] %s273
          %279 = dma.hbm_to_vmem [thread:$0]  %s272, 1024, %s274, %s263, 256, 128, 8
        $region36: #{tpu_custom_call.1} parent=31 // pred_fallthru
          _
        // Predicated region
        $region37: #{tpu_custom_call.1} parent=31 // pred_check
          %p280 = pneg %p148
        $region38: #{tpu_custom_call.1} parent=31 // pred_check_branch
          %282 = sbr.rel (%p280) target = $region40
        $region39: #{tpu_custom_call.1} parent=31 // pred_region
          %s283 = sand.u32 %s138, 1
          %s284 = sand.u32 %s138, 1
          %s285 = smul.addr %s284, 32
          %s286 = scalar_lea.vmem [#allocation8], %s285
          %s287 = smul.addr %s18, 8
          %s288 = scalar_lea.vmem %s5, %s287
          // Predicated region
          $region41: #{tpu_custom_call.1} parent=39 // pred_check
            _
          $region42: #{tpu_custom_call.1} parent=39 // pred_check_branch
            %290 = sbr.rel (0) target = $region44
          $region43: #{tpu_custom_call.1} parent=39 // pred_region
            // Predicated region
            $region45: #{tpu_custom_call.1} parent=43 // pred_check
              _
            $region46: #{tpu_custom_call.1} parent=43 // pred_check_branch
              %292 = sbr.rel (0) target = $region48
            $region47: #{tpu_custom_call.1} parent=43 // pred_region
              // Predicated region
              $region60: #{tpu_custom_call.1} parent=47 // pred_check
                _
              $region61: #{tpu_custom_call.1} parent=47 // pred_check_branch
                %314 = sbr.rel (0) target = $region63
              $region62: #{tpu_custom_call.1} parent=47 // pred_region
                loop: start=0, step=1, limit=1
                $region64: #{tpu_custom_call.1} parent=62 // loop_pre_header
                  _
                $region65: #{tpu_custom_call.1} parent=62 // loop_header
                  %s316 = sphi 0, %s320
                  %p317 = scmp.ge.s32.totalorder %s316, 1
                  %s321 = sphi %s288, %s288
                  %s322 = sphi %s286, %s286
                $region66: #{tpu_custom_call.1} parent=62 // loop_header_branch
                  %319 = sbr.rel (%p317) target = $region70
                $region67: #{tpu_custom_call.1} parent=62 // loop_body
                  %v323 = vld [vmem:[%s321] sm:$0xff]
                  %324 = vst [vmem:[%s322] sm:$0xff] %v323
                  %v325 = vld [vmem:[%s321 + $0x10] sm:$0xff]
                  %326 = vst [vmem:[%s322 + $0x8] sm:$0xff] %v325
                  %v327 = vld [vmem:[%s321 + $0x20] sm:$0xff]
                  %328 = vst [vmem:[%s322 + $0x10] sm:$0xff] %v327
                  %v329 = vld [vmem:[%s321 + $0x30] sm:$0xff]
                  %330 = vst [vmem:[%s322 + $0x18] sm:$0xff] %v329
                $region68: #{tpu_custom_call.1} parent=62 // loop_footer
                  %s320 = sadd.s32 1, %s316
                $region69: #{tpu_custom_call.1} parent=62 // loop_footer_branch
                  %315 = sbr.rel target = $region65
                $region70: #{tpu_custom_call.1} parent=62 // loop_exit
                  _
              $region63: #{tpu_custom_call.1} parent=47 // pred_fallthru
                _
              // Predicated region
              $region71: #{tpu_custom_call.1} parent=47 // pred_check
                _
              $region72: #{tpu_custom_call.1} parent=47 // pred_check_branch
                %332 = sbr.rel target = $region74
              $region73: #{tpu_custom_call.1} parent=47 // pred_region
                _
              $region74: #{tpu_custom_call.1} parent=47 // pred_fallthru
                _
            $region48: #{tpu_custom_call.1} parent=43 // pred_fallthru
              _
            // Predicated region
            $region49: #{tpu_custom_call.1} parent=43 // pred_check
              _
            $region50: #{tpu_custom_call.1} parent=43 // pred_check_branch
              %294 = sbr.rel target = $region52
            $region51: #{tpu_custom_call.1} parent=43 // pred_region
              %s296 = ssub.s32 256, 1
              loop: start=0, step=1, limit=1
              $region53: #{tpu_custom_call.1} parent=51 // loop_pre_header
                _
              $region54: #{tpu_custom_call.1} parent=51 // loop_header
                %s298 = sphi 0, %s302
                %p299 = scmp.ge.s32.totalorder %s298, 1
                %s303 = sphi %s288, %s288
                %s304 = sphi %s286, %s286
              $region55: #{tpu_custom_call.1} parent=51 // loop_header_branch
                %301 = sbr.rel (%p299) target = $region59
              $region56: #{tpu_custom_call.1} parent=51 // loop_body
                %v305 = vld [vmem:[%s303] sm:%s296]
                %306 = vst [vmem:[%s304] sm:%s296] %v305
                %v307 = vld [vmem:[%s303 + $0x10] sm:%s296]
                %308 = vst [vmem:[%s304 + $0x8] sm:%s296] %v307
                %v309 = vld [vmem:[%s303 + $0x20] sm:%s296]
                %310 = vst [vmem:[%s304 + $0x10] sm:%s296] %v309
                %v311 = vld [vmem:[%s303 + $0x30] sm:%s296]
                %312 = vst [vmem:[%s304 + $0x18] sm:%s296] %v311
              $region57: #{tpu_custom_call.1} parent=51 // loop_footer
                %s302 = sadd.s32 1, %s298
              $region58: #{tpu_custom_call.1} parent=51 // loop_footer_branch
                %297 = sbr.rel target = $region54
              $region59: #{tpu_custom_call.1} parent=51 // loop_exit
                _
            $region52: #{tpu_custom_call.1} parent=43 // pred_fallthru
              _
          $region44: #{tpu_custom_call.1} parent=39 // pred_fallthru
            _
          %333 = vnop
        $region40: #{tpu_custom_call.1} parent=31 // pred_fallthru
          _
        // Predicated region
        $region75: #{tpu_custom_call.1} parent=31 // pred_check
          %p334 = pneg %p174
        $region76: #{tpu_custom_call.1} parent=31 // pred_check_branch
          %336 = sbr.rel (%p334) target = $region78
        $region77: #{tpu_custom_call.1} parent=31 // pred_region
          %s337 = sand.u32 %s18, 1
          %s338 = scalar_lea.sflag [#allocation3], %s337
          %s339 = sand.u32 %s164, 1
          %s340 = smul.addr %s339, 32
          %s341 = scalar_lea.vmem [#allocation9], %s340
          %343 = vsyncadd %s338, 0
          %s344 = smul.addr %s18, 8
          %s345 = scalar_lea.hbm %s6, %s344
          %s346 = sshll.u32 %s345, 4
          %s347 = int_to_ptr.hbm [resolvable:$true] %s346
          %s348 = sshll.u32 %s341, 4
          %s349 = int_to_ptr.vmem [resolvable:$true] %s348
          %354 = dma.hbm_to_vmem [thread:$0]  %s347, 512, %s349, %s338, 256, 128, 8
        $region78: #{tpu_custom_call.1} parent=31 // pred_fallthru
          _
      $region32: #{tpu_custom_call.1} parent=5 // pred_fallthru
        _
      %p355 = scmp.le.s32.totalorder 1, %s18
      %p356 = scmp.lt.s32.totalorder %s18, 3
      %p357 = pnand %p355, %p356
      %p358 = pneg %p357
      // Predicated region
      $region79: #{tpu_custom_call.1} parent=5 // pred_check
        _
      $region80: #{tpu_custom_call.1} parent=5 // pred_check_branch
        %360 = sbr.rel (%p357) target = $region82
      $region81: #{tpu_custom_call.1} parent=5 // pred_region
        %s361 = ssub.s32 %s18, 1
        // Predicated region
        $region83: #{tpu_custom_call.1} parent=81 // pred_check
          %p362 = pneg %p39
        $region84: #{tpu_custom_call.1} parent=81 // pred_check_branch
          %364 = sbr.rel (%p362) target = $region86
        $region85: #{tpu_custom_call.1} parent=81 // pred_region
          %366 = dma.done [#allocation3], 512
        $region86: #{tpu_custom_call.1} parent=81 // pred_fallthru
          _
        // Predicated region
        $region87: #{tpu_custom_call.1} parent=81 // pred_check
          %p367 = pneg %p60
        $region88: #{tpu_custom_call.1} parent=81 // pred_check_branch
          %369 = sbr.rel (%p367) target = $region90
        $region89: #{tpu_custom_call.1} parent=81 // pred_region
          %371 = dma.done [#allocation6], 512
        $region90: #{tpu_custom_call.1} parent=81 // pred_fallthru
          _
        %s372 = sand.u32 %s23, 1
        %s373 = scalar_lea.sflag [#allocation3], %s372
        %s374 = sand.u32 %s115, 1
        %s375 = smul.addr %s374, 64
        %s376 = scalar_lea.vmem [#allocation7], %s375
        // Predicated region
        $region91: #{tpu_custom_call.1} parent=81 // pred_check
          %p377 = pneg %p128
        $region92: #{tpu_custom_call.1} parent=81 // pred_check_branch
          %379 = sbr.rel (%p377) target = $region94
        $region93: #{tpu_custom_call.1} parent=81 // pred_region
          %381 = dma.done %s373, 1024
        $region94: #{tpu_custom_call.1} parent=81 // pred_fallthru
          _
        %s382 = sand.u32 %s141, 1
        %s383 = sand.u32 %s141, 1
        %s384 = smul.addr %s383, 32
        %s385 = scalar_lea.vmem [#allocation8], %s384
        // Predicated region
        $region95: #{tpu_custom_call.1} parent=81 // pred_check
          %p386 = pneg %p154
        $region96: #{tpu_custom_call.1} parent=81 // pred_check_branch
          %388 = sbr.rel (%p386) target = $region98
        $region97: #{tpu_custom_call.1} parent=81 // pred_region
          _
        $region98: #{tpu_custom_call.1} parent=81 // pred_fallthru
          _
        %s389 = sand.u32 %s23, 1
        %s390 = scalar_lea.sflag [#allocation3], %s389
        %s391 = sand.u32 %s167, 1
        %s392 = smul.addr %s391, 32
        %s393 = scalar_lea.vmem [#allocation9], %s392
        // Predicated region
        $region99: #{tpu_custom_call.1} parent=81 // pred_check
          %p394 = pneg %p180
        $region100: #{tpu_custom_call.1} parent=81 // pred_check_branch
          %396 = sbr.rel (%p394) target = $region102
        $region101: #{tpu_custom_call.1} parent=81 // pred_region
          %398 = dma.done %s390, 512
        $region102: #{tpu_custom_call.1} parent=81 // pred_fallthru
          _
        %p399 = pneg %p39
        %p400 = pneg %p36
        %p401 = pneg %p60
        %p402 = pneg %p57
        %p403 = pneg %p81
        %p404 = pneg %p78
        %p405 = pneg %p102
        %p406 = pneg %p99
        %s407 = sand.u32 %s23, 1
        %s408 = scalar_lea.sflag [#allocation3], %s407
        %s409 = sand.u32 %s115, 1
        %s410 = smul.addr %s409, 64
        %s411 = scalar_lea.vmem [#allocation7], %s410
        %p412 = pneg %p128
        %p413 = pneg %p125
        %s414 = sand.u32 %s141, 1
        %s415 = sand.u32 %s141, 1
        %s416 = smul.addr %s415, 32
        %s417 = scalar_lea.vmem [#allocation8], %s416
        %p418 = pneg %p154
        %p419 = pneg %p151
        %s420 = sand.u32 %s23, 1
        %s421 = scalar_lea.sflag [#allocation3], %s420
        %s422 = sand.u32 %s167, 1
        %s423 = smul.addr %s422, 32
        %s424 = scalar_lea.vmem [#allocation9], %s423
        %p425 = pneg %p180
        %p426 = pneg %p177
        %p427 = pneg %p206
        %p428 = pneg %p203
        %s429 = sand.u32 %s193, 1
        %s430 = scalar_lea.sflag [#allocation4], %s429
        %s431 = sand.u32 %s193, 1
        %s432 = smul.addr %s431, 32
        %s433 = scalar_lea.vmem [#allocation10], %s432
        %v434 = vld [vmem:[#allocation2] sm:$0xff]
        %v435 = vld [vmem:[#allocation2 + $0x8] sm:$0xff]
        %v436 = vld [vmem:[#allocation2 + $0x10] sm:$0xff]
        %v437 = vld [vmem:[#allocation2 + $0x18] sm:$0xff]
        %v438 = vld [vmem:[#allocation5] sm:$0xff]
        %v439 = vld [vmem:[#allocation5 + $0x8] sm:$0xff]
        %v440 = vld [vmem:[#allocation5 + $0x10] sm:$0xff]
        %v441 = vld [vmem:[#allocation5 + $0x18] sm:$0xff]
        %v442 = vld [vmem:[%s2] sm:$0xff]
        %v443 = vld [vmem:[%s2 + $0x8] sm:$0xff]
        %v444 = vld [vmem:[%s2 + $0x10] sm:$0xff]
        %v445 = vld [vmem:[%s2 + $0x18] sm:$0xff]
        %v446 = vld [vmem:[%s3] sm:$0xff]
        %v447 = vld [vmem:[%s3 + $0x8] sm:$0xff]
        %v448 = vld [vmem:[%s3 + $0x10] sm:$0xff]
        %v449 = vld [vmem:[%s3 + $0x18] sm:$0xff]
        %v450 = vld [vmem:[%s376] sm:$0xff]
        %v451 = vld [vmem:[%s376 + $0x8] sm:$0xff]
        %v452 = vld [vmem:[%s376 + $0x10] sm:$0xff]
        %v453 = vld [vmem:[%s376 + $0x18] sm:$0xff]
        %v454 = vld [vmem:[%s376 + $0x20] sm:$0xff]
        %v455 = vld [vmem:[%s376 + $0x28] sm:$0xff]
        %v456 = vld [vmem:[%s376 + $0x30] sm:$0xff]
        %v457 = vld [vmem:[%s376 + $0x38] sm:$0xff]
        %v458 = vld [vmem:[%s385] sm:$0xff]
        %v459 = vld [vmem:[%s385 + $0x8] sm:$0xff]
        %v460 = vld [vmem:[%s385 + $0x10] sm:$0xff]
        %v461 = vld [vmem:[%s385 + $0x18] sm:$0xff]
        %v462 = vld [vmem:[%s393] sm:$0xff]
        %v463 = vld [vmem:[%s393 + $0x8] sm:$0xff]
        %v464 = vld [vmem:[%s393 + $0x10] sm:$0xff]
        %v465 = vld [vmem:[%s393 + $0x18] sm:$0xff]
        %467 = vset.pattern.permute.xlu0 0
        %468 = vperm.xlu0 %467, %v442
        %v469 = vpop.permute.xlu0 %468
        %472 = vset.pattern.permute.xlu0 0
        %473 = vperm.xlu0 %472, %v443
        %v474 = vpop.permute.xlu0 %473
        %477 = vset.pattern.permute.xlu0 0
        %478 = vperm.xlu0 %477, %v444
        %v479 = vpop.permute.xlu0 %478
        %482 = vset.pattern.permute.xlu0 0
        %483 = vperm.xlu0 %482, %v445
        %v484 = vpop.permute.xlu0 %483
        %vm486 = vcmask 523264
        %v488 = vsel %vm486, %v434, 0
        %v491 = vsel %vm486, %v435, 0
        %v494 = vsel %vm486, %v436, 0
        %v497 = vsel %vm486, %v437, 0
        %499 = vmatpush.msra.mxu0 0.0
        %500 = vmatpush.msra.mxu0 0.0
        %501 = vmatpush.msra.mxu0 0.0
        %502 = vmatpush.msra.mxu0 0.0
        %503 = vmatpush.msra.mxu0 0.0
        %504 = vmatpush.msra.mxu0 0.0
        %505 = vmatpush.msra.mxu0 0.0
        %506 = vmatpush.msra.mxu0 0.0
        %507 = vmatpush.msra.mxu0 %v457
        %508 = vmatpush.msra.mxu0 %v456
        %509 = vmatpush.msra.mxu0 %v455
        %510 = vmatpush.msra.mxu0 %v454
        %511 = vmatpush.msra.mxu0 %v453
        %512 = vmatpush.msra.mxu0 %v452
        %513 = vmatpush.msra.mxu0 %v451
        %514 = vmatpush.msra.mxu0 %v450
        %515 = vmatmul.f32.gmra.mxu0 %v488
        %v516 = vpop.f32.mrf.mxu0
        %v517 = vadd.f32 %v469, %v516
        %518 = vmatmul.f32.gmra.mxu0 %v491
        %v519 = vpop.f32.mrf.mxu0
        %v520 = vadd.f32 %v474, %v519
        %521 = vmatmul.f32.gmra.mxu0 %v494
        %v522 = vpop.f32.mrf.mxu0
        %v523 = vadd.f32 %v479, %v522
        %524 = vmatmul.f32.gmra.mxu0 %v497
        %v525 = vpop.f32.mrf.mxu0
        %v526 = vadd.f32 %v484, %v525
        %527 = vdwg.mxu0
        %v528 = vxor.u32 %v517, 2147483648
        %v529 = vxor.u32 %v520, 2147483648
        %v530 = vxor.u32 %v523, 2147483648
        %v531 = vxor.u32 %v526, 2147483648
        %v532 = vmul.f32 %v528, 1.442695
        %v533 = vpow.pop %v532
        %v534 = vmul.f32 %v529, 1.442695
        %v535 = vpow.pop %v534
        %v536 = vmul.f32 %v530, 1.442695
        %v537 = vpow.pop %v536
        %v538 = vmul.f32 %v531, 1.442695
        %v539 = vpow.pop %v538
        %v540 = vadd.f32 %v533, 1.0
        %v541 = vadd.f32 %v535, 1.0
        %v542 = vadd.f32 %v537, 1.0
        %v543 = vadd.f32 %v539, 1.0
        %v544 = vrcp.pop %v540
        %v545 = vmul.f32 %v540, %v544
        %v546 = vsub.f32 1.0, %v545
        %v547 = vmul.f32 %v544, %v546
        %v548 = vadd.f32 %v544, %v547
        %vm549 = vweird.f32 %v540
        %vm550 = vweird.f32 %v544
        %vm551 = vmor %vm549, %vm550
        %v552 = vsel %vm551, %v544, %v548
        %v553 = vand.u32 2147483647, %v540
        %vm554 = vcmp.eq.f32.partialorder %v553, 8.507059e+37
        %v555 = vand.u32 %v540, 2147483648
        %v556 = vor.u32 1.1754944e-38, %v555
        %v557 = vsel %vm554, %v556, %v552
        %v558 = vmul.f32 1.0, %v557
        %v559 = vrcp.pop %v541
        %v560 = vmul.f32 %v541, %v559
        %v561 = vsub.f32 1.0, %v560
        %v562 = vmul.f32 %v559, %v561
        %v563 = vadd.f32 %v559, %v562
        %vm564 = vweird.f32 %v541
        %vm565 = vweird.f32 %v559
        %vm566 = vmor %vm564, %vm565
        %v567 = vsel %vm566, %v559, %v563
        %v568 = vand.u32 2147483647, %v541
        %vm569 = vcmp.eq.f32.partialorder %v568, 8.507059e+37
        %v570 = vand.u32 %v541, 2147483648
        %v571 = vor.u32 1.1754944e-38, %v570
        %v572 = vsel %vm569, %v571, %v567
        %v573 = vmul.f32 1.0, %v572
        %v574 = vrcp.pop %v542
        %v575 = vmul.f32 %v542, %v574
        %v576 = vsub.f32 1.0, %v575
        %v577 = vmul.f32 %v574, %v576
        %v578 = vadd.f32 %v574, %v577
        %vm579 = vweird.f32 %v542
        %vm580 = vweird.f32 %v574
        %vm581 = vmor %vm579, %vm580
        %v582 = vsel %vm581, %v574, %v578
        %v583 = vand.u32 2147483647, %v542
        %vm584 = vcmp.eq.f32.partialorder %v583, 8.507059e+37
        %v585 = vand.u32 %v542, 2147483648
        %v586 = vor.u32 1.1754944e-38, %v585
        %v587 = vsel %vm584, %v586, %v582
        %v588 = vmul.f32 1.0, %v587
        %v589 = vrcp.pop %v543
        %v590 = vmul.f32 %v543, %v589
        %v591 = vsub.f32 1.0, %v590
        %v592 = vmul.f32 %v589, %v591
        %v593 = vadd.f32 %v589, %v592
        %vm594 = vweird.f32 %v543
        %vm595 = vweird.f32 %v589
        %vm596 = vmor %vm594, %vm595
        %v597 = vsel %vm596, %v589, %v593
        %v598 = vand.u32 2147483647, %v543
        %vm599 = vcmp.eq.f32.partialorder %v598, 8.507059e+37
        %v600 = vand.u32 %v543, 2147483648
        %v601 = vor.u32 1.1754944e-38, %v600
        %v602 = vsel %vm599, %v601, %v597
        %v603 = vmul.f32 1.0, %v602
        %vm604 = vcmp.lt.f32.partialorder %v458, %v558
        %vm605 = vcmp.lt.f32.partialorder %v459, %v573
        %vm606 = vcmp.lt.f32.partialorder %v460, %v588
        %vm607 = vcmp.lt.f32.partialorder %v461, %v603
        %v608 = vsel %vm604, 1, 0
        %v609 = vsel %vm605, 1, 0
        %v610 = vsel %vm606, 1, 0
        %v611 = vsel %vm607, 1, 0
        %v612 = vcvt.s32.f32 %v608
        %v613 = vcvt.s32.f32 %v609
        %v614 = vcvt.s32.f32 %v610
        %v615 = vcvt.s32.f32 %v611
        %617 = vset.pattern.permute.xlu0 0
        %618 = vperm.xlu0 %617, %v446
        %v619 = vpop.permute.xlu0 %618
        %622 = vset.pattern.permute.xlu0 0
        %623 = vperm.xlu0 %622, %v447
        %v624 = vpop.permute.xlu0 %623
        %627 = vset.pattern.permute.xlu0 0
        %628 = vperm.xlu0 %627, %v448
        %v629 = vpop.permute.xlu0 %628
        %632 = vset.pattern.permute.xlu0 0
        %633 = vperm.xlu0 %632, %v449
        %v634 = vpop.permute.xlu0 %633
        %vm636 = vcmask 261120
        %v638 = vsel %vm636, %v438, 0
        %v641 = vsel %vm636, %v439, 0
        %v644 = vsel %vm636, %v440, 0
        %v647 = vsel %vm636, %v441, 0
        %649 = vmatpush.msra.mxu0 0.0
        %650 = vmatpush.msra.mxu0 0.0
        %651 = vmatpush.msra.mxu0 0.0
        %652 = vmatpush.msra.mxu0 0.0
        %653 = vmatpush.msra.mxu0 0.0
        %654 = vmatpush.msra.mxu0 0.0
        %655 = vmatpush.msra.mxu0 0.0
        %656 = vmatpush.msra.mxu0 0.0
        %657 = vmatpush.msra.mxu0 0.0
        %658 = vmatpush.msra.mxu0 0.0
        %659 = vmatpush.msra.mxu0 0.0
        %660 = vmatpush.msra.mxu0 0.0
        %661 = vmatpush.msra.mxu0 %v615
        %662 = vmatpush.msra.mxu0 %v614
        %663 = vmatpush.msra.mxu0 %v613
        %664 = vmatpush.msra.mxu0 %v612
        %665 = vmatmul.f32.gmra.mxu0 %v638
        %v666 = vpop.f32.mrf.mxu0
        %v667 = vadd.f32 %v619, %v666
        %668 = vmatmul.f32.gmra.mxu0 %v641
        %v669 = vpop.f32.mrf.mxu0
        %v670 = vadd.f32 %v624, %v669
        %671 = vmatmul.f32.gmra.mxu0 %v644
        %v672 = vpop.f32.mrf.mxu0
        %v673 = vadd.f32 %v629, %v672
        %674 = vmatmul.f32.gmra.mxu0 %v647
        %v675 = vpop.f32.mrf.mxu0
        %v676 = vadd.f32 %v634, %v675
        %677 = vdwg.mxu0
        %v678 = vxor.u32 %v667, 2147483648
        %v679 = vxor.u32 %v670, 2147483648
        %v680 = vxor.u32 %v673, 2147483648
        %v681 = vxor.u32 %v676, 2147483648
        %v682 = vmul.f32 %v678, 1.442695
        %v683 = vpow.pop %v682
        %v684 = vmul.f32 %v679, 1.442695
        %v685 = vpow.pop %v684
        %v686 = vmul.f32 %v680, 1.442695
        %v687 = vpow.pop %v686
        %v688 = vmul.f32 %v681, 1.442695
        %v689 = vpow.pop %v688
        %v690 = vadd.f32 %v683, 1.0
        %v691 = vadd.f32 %v685, 1.0
        %v692 = vadd.f32 %v687, 1.0
        %v693 = vadd.f32 %v689, 1.0
        %v694 = vrcp.pop %v690
        %v695 = vmul.f32 %v690, %v694
        %v696 = vsub.f32 1.0, %v695
        %v697 = vmul.f32 %v694, %v696
        %v698 = vadd.f32 %v694, %v697
        %vm699 = vweird.f32 %v690
        %vm700 = vweird.f32 %v694
        %vm701 = vmor %vm699, %vm700
        %v702 = vsel %vm701, %v694, %v698
        %v703 = vand.u32 2147483647, %v690
        %vm704 = vcmp.eq.f32.partialorder %v703, 8.507059e+37
        %v705 = vand.u32 %v690, 2147483648
        %v706 = vor.u32 1.1754944e-38, %v705
        %v707 = vsel %vm704, %v706, %v702
        %v708 = vmul.f32 1.0, %v707
        %v709 = vrcp.pop %v691
        %v710 = vmul.f32 %v691, %v709
        %v711 = vsub.f32 1.0, %v710
        %v712 = vmul.f32 %v709, %v711
        %v713 = vadd.f32 %v709, %v712
        %vm714 = vweird.f32 %v691
        %vm715 = vweird.f32 %v709
        %vm716 = vmor %vm714, %vm715
        %v717 = vsel %vm716, %v709, %v713
        %v718 = vand.u32 2147483647, %v691
        %vm719 = vcmp.eq.f32.partialorder %v718, 8.507059e+37
        %v720 = vand.u32 %v691, 2147483648
        %v721 = vor.u32 1.1754944e-38, %v720
        %v722 = vsel %vm719, %v721, %v717
        %v723 = vmul.f32 1.0, %v722
        %v724 = vrcp.pop %v692
        %v725 = vmul.f32 %v692, %v724
        %v726 = vsub.f32 1.0, %v725
        %v727 = vmul.f32 %v724, %v726
        %v728 = vadd.f32 %v724, %v727
        %vm729 = vweird.f32 %v692
        %vm730 = vweird.f32 %v724
        %vm731 = vmor %vm729, %vm730
        %v732 = vsel %vm731, %v724, %v728
        %v733 = vand.u32 2147483647, %v692
        %vm734 = vcmp.eq.f32.partialorder %v733, 8.507059e+37
        %v735 = vand.u32 %v692, 2147483648
        %v736 = vor.u32 1.1754944e-38, %v735
        %v737 = vsel %vm734, %v736, %v732
        %v738 = vmul.f32 1.0, %v737
        %v739 = vrcp.pop %v693
        %v740 = vmul.f32 %v693, %v739
        %v741 = vsub.f32 1.0, %v740
        %v742 = vmul.f32 %v739, %v741
        %v743 = vadd.f32 %v739, %v742
        %vm744 = vweird.f32 %v693
        %vm745 = vweird.f32 %v739
        %vm746 = vmor %vm744, %vm745
        %v747 = vsel %vm746, %v739, %v743
        %v748 = vand.u32 2147483647, %v693
        %vm749 = vcmp.eq.f32.partialorder %v748, 8.507059e+37
        %v750 = vand.u32 %v693, 2147483648
        %v751 = vor.u32 1.1754944e-38, %v750
        %v752 = vsel %vm749, %v751, %v747
        %v753 = vmul.f32 1.0, %v752
        %vm754 = vcmp.lt.f32.partialorder %v462, %v708
        %vm755 = vcmp.lt.f32.partialorder %v463, %v723
        %vm756 = vcmp.lt.f32.partialorder %v464, %v738
        %vm757 = vcmp.lt.f32.partialorder %v465, %v753
        %v758 = vsel %vm754, 1, 0
        %v759 = vsel %vm755, 1, 0
        %v760 = vsel %vm756, 1, 0
        %v761 = vsel %vm757, 1, 0
        %v762 = vcvt.s32.f32 %v758
        %v763 = vcvt.s32.f32 %v759
        %v764 = vcvt.s32.f32 %v760
        %v765 = vcvt.s32.f32 %v761
        %766 = vst [vmem:[%s433] sm:$0xff] %v762
        %767 = vst [vmem:[%s433 + $0x8] sm:$0xff] %v763
        %768 = vst [vmem:[%s433 + $0x10] sm:$0xff] %v764
        %769 = vst [vmem:[%s433 + $0x18] sm:$0xff] %v765
        %s770 = sand.u32 %s193, 1
        %s771 = scalar_lea.sflag [#allocation4], %s770
        %s772 = sand.u32 %s193, 1
        %s773 = smul.addr %s772, 32
        %s774 = scalar_lea.vmem [#allocation10], %s773
        // Predicated region
        $region103: #{tpu_custom_call.1} parent=81 // pred_check
          %p775 = pneg %p203
        $region104: #{tpu_custom_call.1} parent=81 // pred_check_branch
          %777 = sbr.rel (%p775) target = $region106
        $region105: #{tpu_custom_call.1} parent=81 // pred_region
          %779 = vsyncadd %s771, 0
          %s780 = smul.addr %s23, 8
          %s781 = scalar_lea.hbm %s7, %s780
          %s782 = sshll.u32 %s774, 4
          %s783 = int_to_ptr.vmem [resolvable:$true] %s782
          %s784 = sshll.u32 %s781, 4
          %s785 = int_to_ptr.hbm [resolvable:$true] %s784
          %790 = dma.vmem_to_hbm [thread:$0]  %s783, 512, %s785, %s771, 128, 256, 8
        $region106: #{tpu_custom_call.1} parent=81 // pred_fallthru
          _
      $region82: #{tpu_custom_call.1} parent=5 // pred_fallthru
        _
      %p791 = scmp.le.s32.totalorder 2, %s18
      // Predicated region
      $region107: #{tpu_custom_call.1} parent=5 // pred_check
        %p792 = pneg %p791
      $region108: #{tpu_custom_call.1} parent=5 // pred_check_branch
        %794 = sbr.rel (%p792) target = $region110
      $region109: #{tpu_custom_call.1} parent=5 // pred_region
        %s795 = ssub.s32 %s18, 2
        // Predicated region
        $region111: #{tpu_custom_call.1} parent=109 // pred_check
          %p796 = pneg %p209
        $region112: #{tpu_custom_call.1} parent=109 // pred_check_branch
          %798 = sbr.rel (%p796) target = $region114
        $region113: #{tpu_custom_call.1} parent=109 // pred_region
          %s799 = sand.u32 %s194, 1
          %s800 = scalar_lea.sflag [#allocation4], %s799
          %s801 = sand.u32 %s194, 1
          %s802 = smul.addr %s801, 32
          %s803 = scalar_lea.vmem [#allocation10], %s802
          %805 = dma.done %s800, 512
        $region114: #{tpu_custom_call.1} parent=109 // pred_fallthru
          _
      $region110: #{tpu_custom_call.1} parent=5 // pred_fallthru
        _
    $region6: #{tpu_custom_call.1} parent=1 // loop_footer
      %s22 = sadd.s32 1, %s18
    $region7: #{tpu_custom_call.1} parent=1 // loop_footer_branch
      %17 = sbr.rel target = $region3
    $region8: #{tpu_custom_call.1} parent=1 // loop_exit
      _
    %806 = vsyncpa [#allocation3], 1
    %s807 = scalar_lea.sflag [#allocation3], 1
    %808 = vsyncpa %s807, 1
    %809 = vsyncpa [#allocation6], 1
    %810 = vsyncpa [#allocation4], 1
    %s811 = scalar_lea.sflag [#allocation4], 1
    %812 = vsyncpa %s811, 1

</llo_original>
